<compile_context>
chip_gen: v7x
topology: tpu7x:2x2x1
jax: 0.10.0
libtpu: 0.0.40
codegen_flags: <defaults>
</compile_context>

<pallas_src>
import functools

import jax
import jax.numpy as jnp
from jax.experimental import pallas as pl
from jax.experimental.pallas import tpu as pltpu


def _round_up(n, m):
    return ((n + m - 1) // m) * m


def _cdiv(a, b):
    return (a + b - 1) // b


def identity_model_kernel(x_ref, c_ref, w_ref, o_ref, *, num_stripes, d_out_pad):
    """One fused matmul (all K sub-dynamics + bias + control) with per-stripe
    weighted accumulation; only one [tm, d_out_pad] slab is live at a time."""
    x = x_ref[...]                                          # [tm, d_in_pad]
    acc = jnp.zeros((x.shape[0], d_out_pad), jnp.float32)
    for s in range(num_stripes):                            # small static unroll
        lo = s * d_out_pad
        ys = jnp.dot(x, w_ref[:, lo:lo + d_out_pad],
                     preferred_element_type=jnp.float32)    # [tm, d_out_pad]
        acc = acc + c_ref[:, lo:lo + d_out_pad] * ys        # full-vreg VPU fma
    o_ref[...] = acc.astype(o_ref.dtype)


def pack_identity_model_weights(w_stack, b_stack, wbt):
    """Pack frozen weights ONCE into a single lane-padded matrix.

    w_stack: [K, D_in, D_out]  (stored [in, out] for x @ W on the MXU)
    b_stack: [K, D_out]
    wbt:     [C, D_out]        (effective SpectralLinear weight, transposed)

    Augmented-input lane convention (must match identity_model_forward):
      lanes [0:D_in]       -> x
      lanes [D_in:D_in+C]  -> relu(U)[:, idx]
      lane  D_in+C         -> constant 1.0 (drives the bias row)
    """
    K, d_in, d_out = w_stack.shape
    C = wbt.shape[0]
    d_in_pad = _round_up(d_in + C + 1, 128)
    d_out_pad = _round_up(d_out, 128)
    num_stripes = K + 1                                     # K sub-dyn + control

    wcat = jnp.zeros((d_in_pad, num_stripes * d_out_pad), jnp.float32)
    for i in range(K):
        lo = i * d_out_pad
        wcat = wcat.at[:d_in, lo:lo + d_out].set(w_stack[i].astype(jnp.float32))
        wcat = wcat.at[d_in + C, lo:lo + d_out].set(b_stack[i].astype(jnp.float32))
    lo = K * d_out_pad
    wcat = wcat.at[d_in:d_in + C, lo:lo + d_out].set(wbt.astype(jnp.float32))
    return wcat


@functools.partial(jax.jit, static_argnames=("d_out", "tile_m"))
def identity_model_forward(x, idx, coeffs, U, wcat, *, d_out, tile_m=128):
    """x: [B, D_in]; idx: [B] int32 time indices; coeffs: [K, T]; U: [C, T];
    wcat: packed weights from pack_identity_model_weights."""
    B, d_in = x.shape
    K = coeffs.shape[0]
    C = U.shape[0]
    d_in_pad = wcat.shape[0]
    d_out_pad = _round_up(d_out, 128)
    num_stripes = wcat.shape[1] // d_out_pad                # == K + 1

    # ---- tile / grid selection -----------------------------------------
    b8 = _round_up(B, 8)
    tm_cap = max(8, min(tile_m, b8))
    n_tiles = _cdiv(b8, tm_cap)
    if b8 >= 16:
        n_tiles = max(n_tiles, 2)        # let v7x's 2 TensorCores both work
    tm = _round_up(_cdiv(b8, n_tiles), 8)
    b_pad = n_tiles * tm                 # over-padding bounded by < one tile

    # ---- per-call operand prep (all fused under this jit) ---------------
    c_g = coeffs[:, idx].T.astype(jnp.float32)                # [B, K]
    u_g = jnp.maximum(U[:, idx], 0.0).T.astype(jnp.float32)   # [B, C] relu(U)

    # Augmented, lane-dense input: [x | relu(U) | 1.0 | 0-pad].
    x_aug = jnp.zeros((b_pad, d_in_pad), jnp.float32)
    x_aug = x_aug.at[:B, :d_in].set(x.astype(jnp.float32))
    x_aug = x_aug.at[:B, d_in:d_in + C].set(u_g)
    x_aug = x_aug.at[:B, d_in + C].set(1.0)

    # Coefficients pre-broadcast across each 128-lane output stripe; the
    # control stripe gets a constant K (the B(.) term is summed K times).
    c_full = jnp.concatenate(
        [c_g, jnp.full((B, 1), float(K), jnp.float32)], axis=1)    # [B, K+1]
    c_rep = jnp.repeat(c_full, d_out_pad, axis=1)                  # [B, (K+1)*dop]
    c_p = jnp.zeros((b_pad, num_stripes * d_out_pad), jnp.float32)
    c_p = c_p.at[:B].set(c_rep)

    flops = 2 * b_pad * d_in_pad * num_stripes * d_out_pad
    bytes_accessed = 4 * (x_aug.size + c_p.size + wcat.size + b_pad * d_out_pad)

    kernel = functools.partial(identity_model_kernel,
                               num_stripes=num_stripes, d_out_pad=d_out_pad)

    out_pad = pl.pallas_call(
        kernel,
        out_shape=jax.ShapeDtypeStruct((b_pad, d_out_pad), jnp.float32),
        grid_spec=pltpu.PrefetchScalarGridSpec(
            num_scalar_prefetch=0,
            grid=(n_tiles,),
            in_specs=[
                pl.BlockSpec((tm, d_in_pad), lambda i: (i, 0)),            # x tile
                pl.BlockSpec((tm, num_stripes * d_out_pad),
                             lambda i: (i, 0)),                            # coeffs
                pl.BlockSpec((d_in_pad, num_stripes * d_out_pad),
                             lambda i: (0, 0)),                            # weights (resident)
            ],
            out_specs=pl.BlockSpec((tm, d_out_pad), lambda i: (i, 0)),
        ),
        compiler_params=pltpu.CompilerParams(
            dimension_semantics=("parallel",)),
        cost_estimate=pl.CostEstimate(
            flops=flops, transcendentals=0, bytes_accessed=bytes_accessed),
    )(x_aug, c_p, wcat)

    return out_pad[:B, :d_out]


def reference_forward(x, idx, coeffs, U, wbt, w_stack, b_stack):
    K = coeffs.shape[0]
    c = coeffs[:, idx]                          # [K, B]
    u = jnp.maximum(U[:, idx], 0.0)             # [C, B]
    ctrl = u.T @ wbt                            # [B, D_out]
    out = jnp.zeros((x.shape[0], w_stack.shape[2]), jnp.float32)
    for i in range(K):
        out = out + c[i][:, None] * (x @ w_stack[i] + b_stack[i]) + ctrl
    return out


if __name__ == "__main__":
    # IdentityModel(input_size=16, hidden_size=unused, output_size=16,
    #               time_points=32, num_subdyn=3, control_size=1)
    input_size = output_size = 16
    time_points = 32
    num_subdyn = 3
    control_size = 1
    batch = 6

    key = jax.random.PRNGKey(0)
    key, kx, kidx, kc, ku, kb = jax.random.split(key, 6)

    x = jax.random.normal(kx, (batch, input_size), jnp.float32)
    idx = jax.random.randint(kidx, (batch,), 0, time_points, dtype=jnp.int32)

    # coeffs ~ U[0,1) [num_subdyn, time_points]; U ~ N(0,1) [control, time_points]
    coeffs = jax.random.uniform(kc, (num_subdyn, time_points), jnp.float32)
    U = jax.random.normal(ku, (control_size, time_points), jnp.float32)

    # TODO(synk): slim.linear.SpectralLinear's exact SVD reparameterization is
    # done host-side; the kernel only consumes the effective [C, D_out] weight.
    wb_raw = jax.random.normal(kb, (control_size, input_size), jnp.float32)
    wbt = 0.7 * wb_raw / jnp.linalg.norm(wb_raw)        # [C, D_out], sigma = 0.7

    # Frozen per-subdynamic Linear(input_size, output_size) layers, stored
    # transposed ([in, out]) for x @ W on the MXU.
    ws, bs = [], []
    bound = 1.0 / jnp.sqrt(jnp.float32(input_size))
    for _ in range(num_subdyn):
        key, kw, kbi = jax.random.split(key, 3)
        ws.append(jax.random.uniform(kw, (input_size, output_size),
                                     jnp.float32, -bound, bound))
        bs.append(jax.random.uniform(kbi, (output_size,),
                                     jnp.float32, -bound, bound))
    w_stack = jnp.stack(ws)                             # [K, D_in, D_out]
    b_stack = jnp.stack(bs)                             # [K, D_out]

    # One-time packing of the frozen weights (hoisted out of the forward path).
    wcat = pack_identity_model_weights(w_stack, b_stack, wbt)
    wcat = jax.block_until_ready(wcat)

    out = identity_model_forward(x, idx, coeffs, U, wcat, d_out=output_size)
    out = jax.block_until_ready(out)

    ref = reference_forward(x, idx, coeffs, U, wbt, w_stack, b_stack)
    assert out.shape == (batch, output_size)
    assert jnp.allclose(out, ref, atol=1e-5, rtol=1e-5)
    print("KERNEL_OK")
</pallas_src>

<mosaic_0001>
module attributes {stable_mosaic.version = 11 : i64} {
  func.func @identity_model_kernel(%arg0: i32, %arg1: memref<8x128xf32, #tpu.memory_space<vmem>>, %arg2: memref<8x512xf32, #tpu.memory_space<vmem>>, %arg3: memref<128x512xf32, #tpu.memory_space<vmem>>, %arg4: memref<8x128xf32, #tpu.memory_space<vmem>>) attributes {dimension_semantics = [#tpu.dimension_semantics<parallel>], iteration_bounds = array<i64: 1>, scalar_prefetch = 0 : i64, scratch_operands = 0 : i64, tpu.core_type = #tpu.core_type<tc>, window_params = [{transform_indices = @transform_0, window_bounds = array<i64: 8, 128>}, {transform_indices = @transform_1, window_bounds = array<i64: 8, 512>}, {pipeline_mode = #tpu.pipeline_mode<synchronous>, transform_indices = @transform_2, window_bounds = array<i64: 128, 512>}, {transform_indices = @transform_3, window_bounds = array<i64: 8, 128>}]} {
    %c0 = arith.constant 0 : index
    %c0_0 = arith.constant 0 : index
    %0 = vector.load %arg1[%c0, %c0_0] : memref<8x128xf32, #tpu.memory_space<vmem>>, vector<8x128xf32>
    %cst = arith.constant 0.000000e+00 : f32
    %1 = vector.broadcast %cst : f32 to vector<8x128xf32>
    %c0_1 = arith.constant 0 : index
    %c0_2 = arith.constant 0 : index
    %2 = vector.load %arg3[%c0_1, %c0_2] : memref<128x512xf32, #tpu.memory_space<vmem>>, vector<128x128xf32>
    %cst_3 = arith.constant dense<0.000000e+00> : vector<8x128xf32>
    %3 = tpu.matmul %0, %2, %cst_3 {dimension_numbers = #tpu.dot_dimension_numbers<[1], [0], [0], [1], [0, 0, 1, 1], [], []>} : vector<8x128xf32>, vector<128x128xf32>, vector<8x128xf32> -> vector<8x128xf32>
    %c0_4 = arith.constant 0 : index
    %c0_5 = arith.constant 0 : index
    %4 = vector.load %arg2[%c0_4, %c0_5] : memref<8x512xf32, #tpu.memory_space<vmem>>, vector<8x128xf32>
    %5 = arith.mulf %4, %3 : vector<8x128xf32>
    %6 = arith.addf %1, %5 : vector<8x128xf32>
    %c0_6 = arith.constant 0 : index
    %c128 = arith.constant 128 : index
    %7 = vector.load %arg3[%c0_6, %c128] : memref<128x512xf32, #tpu.memory_space<vmem>>, vector<128x128xf32>
    %cst_7 = arith.constant dense<0.000000e+00> : vector<8x128xf32>
    %8 = tpu.matmul %0, %7, %cst_7 {dimension_numbers = #tpu.dot_dimension_numbers<[1], [0], [0], [1], [0, 0, 1, 1], [], []>} : vector<8x128xf32>, vector<128x128xf32>, vector<8x128xf32> -> vector<8x128xf32>
    %c0_8 = arith.constant 0 : index
    %c128_9 = arith.constant 128 : index
    %9 = vector.load %arg2[%c0_8, %c128_9] : memref<8x512xf32, #tpu.memory_space<vmem>>, vector<8x128xf32>
    %10 = arith.mulf %9, %8 : vector<8x128xf32>
    %11 = arith.addf %6, %10 : vector<8x128xf32>
    %c0_10 = arith.constant 0 : index
    %c256 = arith.constant 256 : index
    %12 = vector.load %arg3[%c0_10, %c256] : memref<128x512xf32, #tpu.memory_space<vmem>>, vector<128x128xf32>
    %cst_11 = arith.constant dense<0.000000e+00> : vector<8x128xf32>
    %13 = tpu.matmul %0, %12, %cst_11 {dimension_numbers = #tpu.dot_dimension_numbers<[1], [0], [0], [1], [0, 0, 1, 1], [], []>} : vector<8x128xf32>, vector<128x128xf32>, vector<8x128xf32> -> vector<8x128xf32>
    %c0_12 = arith.constant 0 : index
    %c256_13 = arith.constant 256 : index
    %14 = vector.load %arg2[%c0_12, %c256_13] : memref<8x512xf32, #tpu.memory_space<vmem>>, vector<8x128xf32>
    %15 = arith.mulf %14, %13 : vector<8x128xf32>
    %16 = arith.addf %11, %15 : vector<8x128xf32>
    %c0_14 = arith.constant 0 : index
    %c384 = arith.constant 384 : index
    %17 = vector.load %arg3[%c0_14, %c384] : memref<128x512xf32, #tpu.memory_space<vmem>>, vector<128x128xf32>
    %cst_15 = arith.constant dense<0.000000e+00> : vector<8x128xf32>
    %18 = tpu.matmul %0, %17, %cst_15 {dimension_numbers = #tpu.dot_dimension_numbers<[1], [0], [0], [1], [0, 0, 1, 1], [], []>} : vector<8x128xf32>, vector<128x128xf32>, vector<8x128xf32> -> vector<8x128xf32>
    %c0_16 = arith.constant 0 : index
    %c384_17 = arith.constant 384 : index
    %19 = vector.load %arg2[%c0_16, %c384_17] : memref<8x512xf32, #tpu.memory_space<vmem>>, vector<8x128xf32>
    %20 = arith.mulf %19, %18 : vector<8x128xf32>
    %21 = arith.addf %16, %20 : vector<8x128xf32>
    %c0_18 = arith.constant 0 : index
    %c0_19 = arith.constant 0 : index
    %22 = vector.load %arg4[%c0_18, %c0_19] : memref<8x128xf32, #tpu.memory_space<vmem>>, vector<8x128xf32>
    tpu.vector_store %arg4[%c0_18, %c0_19], %21 {strides = array<i32>} : memref<8x128xf32, #tpu.memory_space<vmem>>, vector<8x128xf32>,
    return
  }
  func.func @transform_0(%arg0: i32) -> (i32, i32) {
    %c0_i32 = arith.constant 0 : i32
    %c0_i32_0 = arith.constant 0 : i32
    return %arg0, %c0_i32 : i32, i32
  }
  func.func @transform_1(%arg0: i32) -> (i32, i32) {
    %c0_i32 = arith.constant 0 : i32
    %c0_i32_0 = arith.constant 0 : i32
    return %arg0, %c0_i32 : i32, i32
  }
  func.func @transform_2(%arg0: i32) -> (i32, i32) {
    %c0_i32 = arith.constant 0 : i32
    %c0_i32_0 = arith.constant 0 : i32
    %c0_i32_1 = arith.constant 0 : i32
    return %c0_i32, %c0_i32_0 : i32, i32
  }
  func.func @transform_3(%arg0: i32) -> (i32, i32) {
    %c0_i32 = arith.constant 0 : i32
    %c0_i32_0 = arith.constant 0 : i32
    return %arg0, %c0_i32 : i32, i32
  }
}

</mosaic_0001>

<llo_original>
// kernel: identity_model_forward.1
$region0: #{identity_model_forward.1}
  #allocation0 [shape = 'u32[]', space=smem, size = 0x4, offset = 0x4, fixed_abs, tag = 'smem constant byte address 0x4 - core index']
  #allocation1 [shape = 'u32[144,128]{1,0:T(1,128)}', space=vmem, size = 0x12000, scoped, tag = 'internal scratch']
  %s0 = inlined_call_operand.vmem [shape: f32[8,128], index: 0, kind: input, shape index: {}]
  %s1 = inlined_call_operand.vmem [shape: f32[8,512], index: 1, kind: input, shape index: {}]
  %s2 = inlined_call_operand.vmem [shape: f32[128,512], index: 2, kind: input, shape index: {}]
  %s3 = inlined_call_operand.hbm [shape: f32[8,128], index: 3, kind: output, shape index: {}]
  %s4 = sld [smem:[#allocation0]]
  $region22: #{identity_model_forward.1} parent=0
    _
  %s6 = ssub.s32 1, %s4
  %s7 = scalar_select 0, %s6, %s4
  $region1: #{identity_model_forward.1} parent=0
    #allocation2 [shape = 'u8[4096]{0}', space=vmem, size = 0x1000, scoped, tag = 'output window, operand 0, single buffered']
    #allocation3 [shape = 's32[1]{0}', space=sflag, size = 0x4, scoped, tag = 'scoped memory for identity_model_forward.1']
    %8 = vsyncpa [#allocation3], 0
    // Predicated region
    $region2: #{identity_model_forward.1} parent=1 // pred_check
      _
    $region3: #{identity_model_forward.1} parent=1 // pred_check_branch
      %10 = sbr.rel (0) target = $region5
    $region4: #{identity_model_forward.1} parent=1 // pred_region
      _
    $region5: #{identity_model_forward.1} parent=1 // pred_fallthru
      _
    // Predicated region
    $region6: #{identity_model_forward.1} parent=1 // pred_check
      _
    $region7: #{identity_model_forward.1} parent=1 // pred_check_branch
      %12 = sbr.rel (0) target = $region9
    $region8: #{identity_model_forward.1} parent=1 // pred_region
      _
    $region9: #{identity_model_forward.1} parent=1 // pred_fallthru
      _
    // Predicated region
    $region10: #{identity_model_forward.1} parent=1 // pred_check
      _
    $region11: #{identity_model_forward.1} parent=1 // pred_check_branch
      %14 = sbr.rel (0) target = $region13
    $region12: #{identity_model_forward.1} parent=1 // pred_region
      _
    $region13: #{identity_model_forward.1} parent=1 // pred_fallthru
      _
    %v15 = vld [vmem:[%s0] sm:$0xff]
    %v16 = vld [vmem:[%s2] sm:$0xff]
    %v17 = vld [vmem:[%s2 + $0x20] sm:$0xff]
    %v18 = vld [vmem:[%s2 + $0x40] sm:$0xff]
    %v19 = vld [vmem:[%s2 + $0x60] sm:$0xff]
    %v20 = vld [vmem:[%s2 + $0x80] sm:$0xff]
    %v21 = vld [vmem:[%s2 + $0xa0] sm:$0xff]
    %v22 = vld [vmem:[%s2 + $0xc0] sm:$0xff]
    %v23 = vld [vmem:[%s2 + $0xe0] sm:$0xff]
    %v24 = vld [vmem:[%s2 + $0x100] sm:$0xff]
    %v25 = vld [vmem:[%s2 + $0x120] sm:$0xff]
    %v26 = vld [vmem:[%s2 + $0x140] sm:$0xff]
    %v27 = vld [vmem:[%s2 + $0x160] sm:$0xff]
    %v28 = vld [vmem:[%s2 + $0x180] sm:$0xff]
    %v29 = vld [vmem:[%s2 + $0x1a0] sm:$0xff]
    %v30 = vld [vmem:[%s2 + $0x1c0] sm:$0xff]
    %v31 = vld [vmem:[%s2 + $0x1e0] sm:$0xff]
    %32 = vmatprep.subr.mxu0 0.0
    %33 = vmatpush1.msra.mxu0 %v16
    %34 = vmatprep.subr.mxu0 0.0
    %35 = vmatpush1.msra.mxu0 %v17
    %36 = vmatprep.subr.mxu0 0.0
    %37 = vmatpush1.msra.mxu0 %v18
    %38 = vmatprep.subr.mxu0 0.0
    %39 = vmatpush1.msra.mxu0 %v19
    %40 = vmatprep.subr.mxu0 0.0
    %41 = vmatpush1.msra.mxu0 %v20
    %42 = vmatprep.subr.mxu0 0.0
    %43 = vmatpush1.msra.mxu0 %v21
    %44 = vmatprep.subr.mxu0 0.0
    %45 = vmatpush1.msra.mxu0 %v22
    %46 = vmatprep.subr.mxu0 0.0
    %47 = vmatpush1.msra.mxu0 %v23
    %48 = vmatprep.subr.mxu0 0.0
    %49 = vmatpush1.msra.mxu0 %v24
    %50 = vmatprep.subr.mxu0 0.0
    %51 = vmatpush1.msra.mxu0 %v25
    %52 = vmatprep.subr.mxu0 0.0
    %53 = vmatpush1.msra.mxu0 %v26
    %54 = vmatprep.subr.mxu0 0.0
    %55 = vmatpush1.msra.mxu0 %v27
    %56 = vmatprep.subr.mxu0 0.0
    %57 = vmatpush1.msra.mxu0 %v28
    %58 = vmatprep.subr.mxu0 0.0
    %59 = vmatpush1.msra.mxu0 %v29
    %60 = vmatprep.subr.mxu0 0.0
    %61 = vmatpush1.msra.mxu0 %v30
    %62 = vmatprep.subr.mxu0 0.0
    %63 = vmatpush1.msra.mxu0 %v31
    %64 = vmatprep.subr.mxu0 0.0
    %65 = vmatpush1.msra.mxu0 0.0
    %66 = vmatprep.subr.mxu0 0.0
    %67 = vmatpush1.msra.mxu0 0.0
    %68 = vmatprep.subr.mxu0 0.0
    %69 = vmatpush1.msra.mxu0 0.0
    %70 = vmatprep.subr.mxu0 0.0
    %71 = vmatpush1.msra.mxu0 0.0
    %72 = vmatprep.subr.mxu0 0.0
    %73 = vmatpush1.msra.mxu0 0.0
    %74 = vmatprep.subr.mxu0 0.0
    %75 = vmatpush1.msra.mxu0 0.0
    %76 = vmatprep.subr.mxu0 0.0
    %77 = vmatpush1.msra.mxu0 0.0
    %78 = vmatprep.subr.mxu0 0.0
    %79 = vmatpush1.msra.mxu0 0.0
    %80 = vmatprep.subr.mxu0 0.0
    %81 = vmatpush1.msra.mxu0 0.0
    %82 = vmatprep.subr.mxu0 0.0
    %83 = vmatpush1.msra.mxu0 0.0
    %84 = vmatprep.subr.mxu0 0.0
    %85 = vmatpush1.msra.mxu0 0.0
    %86 = vmatprep.subr.mxu0 0.0
    %87 = vmatpush1.msra.mxu0 0.0
    %88 = vmatprep.subr.mxu0 0.0
    %89 = vmatpush1.msra.mxu0 0.0
    %90 = vmatprep.subr.mxu0 0.0
    %91 = vmatpush1.msra.mxu0 0.0
    %92 = vmatprep.subr.mxu0 0.0
    %93 = vmatpush1.msra.mxu0 0.0
    %94 = vmatprep.subr.mxu0 0.0
    %95 = vmatpush1.msra.mxu0 0.0
    %96 = vmatprep.mubr.f32.mxu0 0.0
    %97 = vmatmul.mubr.f32.gmra.mrb[0].mxu0 %v15
    %v98 = vpop.f32.mrb[0].mxu0
    %v99 = vadd.f32 0.0, %v98
    %v100 = vpop.f32.mrb[0].mxu0
    %101 = vdwg.mxu0
    %v102 = vld [vmem:[%s1] sm:$0xff]
    %v103 = vmul.f32 %v102, %v99
    %v104 = vadd.f32 %v103, 0.0
    %v105 = vld [vmem:[%s2 + $0x8] sm:$0xff]
    %v106 = vld [vmem:[%s2 + $0x28] sm:$0xff]
    %v107 = vld [vmem:[%s2 + $0x48] sm:$0xff]
    %v108 = vld [vmem:[%s2 + $0x68] sm:$0xff]
    %v109 = vld [vmem:[%s2 + $0x88] sm:$0xff]
    %v110 = vld [vmem:[%s2 + $0xa8] sm:$0xff]
    %v111 = vld [vmem:[%s2 + $0xc8] sm:$0xff]
    %v112 = vld [vmem:[%s2 + $0xe8] sm:$0xff]
    %v113 = vld [vmem:[%s2 + $0x108] sm:$0xff]
    %v114 = vld [vmem:[%s2 + $0x128] sm:$0xff]
    %v115 = vld [vmem:[%s2 + $0x148] sm:$0xff]
    %v116 = vld [vmem:[%s2 + $0x168] sm:$0xff]
    %v117 = vld [vmem:[%s2 + $0x188] sm:$0xff]
    %v118 = vld [vmem:[%s2 + $0x1a8] sm:$0xff]
    %v119 = vld [vmem:[%s2 + $0x1c8] sm:$0xff]
    %v120 = vld [vmem:[%s2 + $0x1e8] sm:$0xff]
    %121 = vmatprep.subr.mxu0 0.0
    %122 = vmatpush1.msra.mxu0 %v105
    %123 = vmatprep.subr.mxu0 0.0
    %124 = vmatpush1.msra.mxu0 %v106
    %125 = vmatprep.subr.mxu0 0.0
    %126 = vmatpush1.msra.mxu0 %v107
    %127 = vmatprep.subr.mxu0 0.0
    %128 = vmatpush1.msra.mxu0 %v108
    %129 = vmatprep.subr.mxu0 0.0
    %130 = vmatpush1.msra.mxu0 %v109
    %131 = vmatprep.subr.mxu0 0.0
    %132 = vmatpush1.msra.mxu0 %v110
    %133 = vmatprep.subr.mxu0 0.0
    %134 = vmatpush1.msra.mxu0 %v111
    %135 = vmatprep.subr.mxu0 0.0
    %136 = vmatpush1.msra.mxu0 %v112
    %137 = vmatprep.subr.mxu0 0.0
    %138 = vmatpush1.msra.mxu0 %v113
    %139 = vmatprep.subr.mxu0 0.0
    %140 = vmatpush1.msra.mxu0 %v114
    %141 = vmatprep.subr.mxu0 0.0
    %142 = vmatpush1.msra.mxu0 %v115
    %143 = vmatprep.subr.mxu0 0.0
    %144 = vmatpush1.msra.mxu0 %v116
    %145 = vmatprep.subr.mxu0 0.0
    %146 = vmatpush1.msra.mxu0 %v117
    %147 = vmatprep.subr.mxu0 0.0
    %148 = vmatpush1.msra.mxu0 %v118
    %149 = vmatprep.subr.mxu0 0.0
    %150 = vmatpush1.msra.mxu0 %v119
    %151 = vmatprep.subr.mxu0 0.0
    %152 = vmatpush1.msra.mxu0 %v120
    %153 = vmatprep.subr.mxu0 0.0
    %154 = vmatpush1.msra.mxu0 0.0
    %155 = vmatprep.subr.mxu0 0.0
    %156 = vmatpush1.msra.mxu0 0.0
    %157 = vmatprep.subr.mxu0 0.0
    %158 = vmatpush1.msra.mxu0 0.0
    %159 = vmatprep.subr.mxu0 0.0
    %160 = vmatpush1.msra.mxu0 0.0
    %161 = vmatprep.subr.mxu0 0.0
    %162 = vmatpush1.msra.mxu0 0.0
    %163 = vmatprep.subr.mxu0 0.0
    %164 = vmatpush1.msra.mxu0 0.0
    %165 = vmatprep.subr.mxu0 0.0
    %166 = vmatpush1.msra.mxu0 0.0
    %167 = vmatprep.subr.mxu0 0.0
    %168 = vmatpush1.msra.mxu0 0.0
    %169 = vmatprep.subr.mxu0 0.0
    %170 = vmatpush1.msra.mxu0 0.0
    %171 = vmatprep.subr.mxu0 0.0
    %172 = vmatpush1.msra.mxu0 0.0
    %173 = vmatprep.subr.mxu0 0.0
    %174 = vmatpush1.msra.mxu0 0.0
    %175 = vmatprep.subr.mxu0 0.0
    %176 = vmatpush1.msra.mxu0 0.0
    %177 = vmatprep.subr.mxu0 0.0
    %178 = vmatpush1.msra.mxu0 0.0
    %179 = vmatprep.subr.mxu0 0.0
    %180 = vmatpush1.msra.mxu0 0.0
    %181 = vmatprep.subr.mxu0 0.0
    %182 = vmatpush1.msra.mxu0 0.0
    %183 = vmatprep.subr.mxu0 0.0
    %184 = vmatpush1.msra.mxu0 0.0
    %185 = vmatprep.mubr.f32.mxu0 0.0
    %186 = vmatmul.mubr.f32.gmra.mrb[0].mxu0 %v15
    %v187 = vpop.f32.mrb[0].mxu0
    %v188 = vadd.f32 0.0, %v187
    %v189 = vpop.f32.mrb[0].mxu0
    %190 = vdwg.mxu0
    %v191 = vld [vmem:[%s1 + $0x8] sm:$0xff]
    %v192 = vmul.f32 %v191, %v188
    %v193 = vadd.f32 %v104, %v192
    %v194 = vld [vmem:[%s2 + $0x10] sm:$0xff]
    %v195 = vld [vmem:[%s2 + $0x30] sm:$0xff]
    %v196 = vld [vmem:[%s2 + $0x50] sm:$0xff]
    %v197 = vld [vmem:[%s2 + $0x70] sm:$0xff]
    %v198 = vld [vmem:[%s2 + $0x90] sm:$0xff]
    %v199 = vld [vmem:[%s2 + $0xb0] sm:$0xff]
    %v200 = vld [vmem:[%s2 + $0xd0] sm:$0xff]
    %v201 = vld [vmem:[%s2 + $0xf0] sm:$0xff]
    %v202 = vld [vmem:[%s2 + $0x110] sm:$0xff]
    %v203 = vld [vmem:[%s2 + $0x130] sm:$0xff]
    %v204 = vld [vmem:[%s2 + $0x150] sm:$0xff]
    %v205 = vld [vmem:[%s2 + $0x170] sm:$0xff]
    %v206 = vld [vmem:[%s2 + $0x190] sm:$0xff]
    %v207 = vld [vmem:[%s2 + $0x1b0] sm:$0xff]
    %v208 = vld [vmem:[%s2 + $0x1d0] sm:$0xff]
    %v209 = vld [vmem:[%s2 + $0x1f0] sm:$0xff]
    %210 = vmatprep.subr.mxu0 0.0
    %211 = vmatpush1.msra.mxu0 %v194
    %212 = vmatprep.subr.mxu0 0.0
    %213 = vmatpush1.msra.mxu0 %v195
    %214 = vmatprep.subr.mxu0 0.0
    %215 = vmatpush1.msra.mxu0 %v196
    %216 = vmatprep.subr.mxu0 0.0
    %217 = vmatpush1.msra.mxu0 %v197
    %218 = vmatprep.subr.mxu0 0.0
    %219 = vmatpush1.msra.mxu0 %v198
    %220 = vmatprep.subr.mxu0 0.0
    %221 = vmatpush1.msra.mxu0 %v199
    %222 = vmatprep.subr.mxu0 0.0
    %223 = vmatpush1.msra.mxu0 %v200
    %224 = vmatprep.subr.mxu0 0.0
    %225 = vmatpush1.msra.mxu0 %v201
    %226 = vmatprep.subr.mxu0 0.0
    %227 = vmatpush1.msra.mxu0 %v202
    %228 = vmatprep.subr.mxu0 0.0
    %229 = vmatpush1.msra.mxu0 %v203
    %230 = vmatprep.subr.mxu0 0.0
    %231 = vmatpush1.msra.mxu0 %v204
    %232 = vmatprep.subr.mxu0 0.0
    %233 = vmatpush1.msra.mxu0 %v205
    %234 = vmatprep.subr.mxu0 0.0
    %235 = vmatpush1.msra.mxu0 %v206
    %236 = vmatprep.subr.mxu0 0.0
    %237 = vmatpush1.msra.mxu0 %v207
    %238 = vmatprep.subr.mxu0 0.0
    %239 = vmatpush1.msra.mxu0 %v208
    %240 = vmatprep.subr.mxu0 0.0
    %241 = vmatpush1.msra.mxu0 %v209
    %242 = vmatprep.subr.mxu0 0.0
    %243 = vmatpush1.msra.mxu0 0.0
    %244 = vmatprep.subr.mxu0 0.0
    %245 = vmatpush1.msra.mxu0 0.0
    %246 = vmatprep.subr.mxu0 0.0
    %247 = vmatpush1.msra.mxu0 0.0
    %248 = vmatprep.subr.mxu0 0.0
    %249 = vmatpush1.msra.mxu0 0.0
    %250 = vmatprep.subr.mxu0 0.0
    %251 = vmatpush1.msra.mxu0 0.0
    %252 = vmatprep.subr.mxu0 0.0
    %253 = vmatpush1.msra.mxu0 0.0
    %254 = vmatprep.subr.mxu0 0.0
    %255 = vmatpush1.msra.mxu0 0.0
    %256 = vmatprep.subr.mxu0 0.0
    %257 = vmatpush1.msra.mxu0 0.0
    %258 = vmatprep.subr.mxu0 0.0
    %259 = vmatpush1.msra.mxu0 0.0
    %260 = vmatprep.subr.mxu0 0.0
    %261 = vmatpush1.msra.mxu0 0.0
    %262 = vmatprep.subr.mxu0 0.0
    %263 = vmatpush1.msra.mxu0 0.0
    %264 = vmatprep.subr.mxu0 0.0
    %265 = vmatpush1.msra.mxu0 0.0
    %266 = vmatprep.subr.mxu0 0.0
    %267 = vmatpush1.msra.mxu0 0.0
    %268 = vmatprep.subr.mxu0 0.0
    %269 = vmatpush1.msra.mxu0 0.0
    %270 = vmatprep.subr.mxu0 0.0
    %271 = vmatpush1.msra.mxu0 0.0
    %272 = vmatprep.subr.mxu0 0.0
    %273 = vmatpush1.msra.mxu0 0.0
    %274 = vmatprep.mubr.f32.mxu0 0.0
    %275 = vmatmul.mubr.f32.gmra.mrb[0].mxu0 %v15
    %v276 = vpop.f32.mrb[0].mxu0
    %v277 = vadd.f32 0.0, %v276
    %v278 = vpop.f32.mrb[0].mxu0
    %279 = vdwg.mxu0
    %v280 = vld [vmem:[%s1 + $0x10] sm:$0xff]
    %v281 = vmul.f32 %v280, %v277
    %v282 = vadd.f32 %v193, %v281
    %v283 = vld [vmem:[%s2 + $0x18] sm:$0xff]
    %v284 = vld [vmem:[%s2 + $0x38] sm:$0xff]
    %v285 = vld [vmem:[%s2 + $0x58] sm:$0xff]
    %v286 = vld [vmem:[%s2 + $0x78] sm:$0xff]
    %v287 = vld [vmem:[%s2 + $0x98] sm:$0xff]
    %v288 = vld [vmem:[%s2 + $0xb8] sm:$0xff]
    %v289 = vld [vmem:[%s2 + $0xd8] sm:$0xff]
    %v290 = vld [vmem:[%s2 + $0xf8] sm:$0xff]
    %v291 = vld [vmem:[%s2 + $0x118] sm:$0xff]
    %v292 = vld [vmem:[%s2 + $0x138] sm:$0xff]
    %v293 = vld [vmem:[%s2 + $0x158] sm:$0xff]
    %v294 = vld [vmem:[%s2 + $0x178] sm:$0xff]
    %v295 = vld [vmem:[%s2 + $0x198] sm:$0xff]
    %v296 = vld [vmem:[%s2 + $0x1b8] sm:$0xff]
    %v297 = vld [vmem:[%s2 + $0x1d8] sm:$0xff]
    %v298 = vld [vmem:[%s2 + $0x1f8] sm:$0xff]
    %299 = vmatprep.subr.mxu0 0.0
    %300 = vmatpush1.msra.mxu0 %v283
    %301 = vmatprep.subr.mxu0 0.0
    %302 = vmatpush1.msra.mxu0 %v284
    %303 = vmatprep.subr.mxu0 0.0
    %304 = vmatpush1.msra.mxu0 %v285
    %305 = vmatprep.subr.mxu0 0.0
    %306 = vmatpush1.msra.mxu0 %v286
    %307 = vmatprep.subr.mxu0 0.0
    %308 = vmatpush1.msra.mxu0 %v287
    %309 = vmatprep.subr.mxu0 0.0
    %310 = vmatpush1.msra.mxu0 %v288
    %311 = vmatprep.subr.mxu0 0.0
    %312 = vmatpush1.msra.mxu0 %v289
    %313 = vmatprep.subr.mxu0 0.0
    %314 = vmatpush1.msra.mxu0 %v290
    %315 = vmatprep.subr.mxu0 0.0
    %316 = vmatpush1.msra.mxu0 %v291
    %317 = vmatprep.subr.mxu0 0.0
    %318 = vmatpush1.msra.mxu0 %v292
    %319 = vmatprep.subr.mxu0 0.0
    %320 = vmatpush1.msra.mxu0 %v293
    %321 = vmatprep.subr.mxu0 0.0
    %322 = vmatpush1.msra.mxu0 %v294
    %323 = vmatprep.subr.mxu0 0.0
    %324 = vmatpush1.msra.mxu0 %v295
    %325 = vmatprep.subr.mxu0 0.0
    %326 = vmatpush1.msra.mxu0 %v296
    %327 = vmatprep.subr.mxu0 0.0
    %328 = vmatpush1.msra.mxu0 %v297
    %329 = vmatprep.subr.mxu0 0.0
    %330 = vmatpush1.msra.mxu0 %v298
    %331 = vmatprep.subr.mxu0 0.0
    %332 = vmatpush1.msra.mxu0 0.0
    %333 = vmatprep.subr.mxu0 0.0
    %334 = vmatpush1.msra.mxu0 0.0
    %335 = vmatprep.subr.mxu0 0.0
    %336 = vmatpush1.msra.mxu0 0.0
    %337 = vmatprep.subr.mxu0 0.0
    %338 = vmatpush1.msra.mxu0 0.0
    %339 = vmatprep.subr.mxu0 0.0
    %340 = vmatpush1.msra.mxu0 0.0
    %341 = vmatprep.subr.mxu0 0.0
    %342 = vmatpush1.msra.mxu0 0.0
    %343 = vmatprep.subr.mxu0 0.0
    %344 = vmatpush1.msra.mxu0 0.0
    %345 = vmatprep.subr.mxu0 0.0
    %346 = vmatpush1.msra.mxu0 0.0
    %347 = vmatprep.subr.mxu0 0.0
    %348 = vmatpush1.msra.mxu0 0.0
    %349 = vmatprep.subr.mxu0 0.0
    %350 = vmatpush1.msra.mxu0 0.0
    %351 = vmatprep.subr.mxu0 0.0
    %352 = vmatpush1.msra.mxu0 0.0
    %353 = vmatprep.subr.mxu0 0.0
    %354 = vmatpush1.msra.mxu0 0.0
    %355 = vmatprep.subr.mxu0 0.0
    %356 = vmatpush1.msra.mxu0 0.0
    %357 = vmatprep.subr.mxu0 0.0
    %358 = vmatpush1.msra.mxu0 0.0
    %359 = vmatprep.subr.mxu0 0.0
    %360 = vmatpush1.msra.mxu0 0.0
    %361 = vmatprep.subr.mxu0 0.0
    %362 = vmatpush1.msra.mxu0 0.0
    %363 = vmatprep.mubr.f32.mxu0 0.0
    %364 = vmatmul.mubr.f32.gmra.mrb[0].mxu0 %v15
    %v365 = vpop.f32.mrb[0].mxu0
    %v366 = vadd.f32 0.0, %v365
    %v367 = vpop.f32.mrb[0].mxu0
    %368 = vdwg.mxu0
    %v369 = vld [vmem:[%s1 + $0x18] sm:$0xff]
    %v370 = vmul.f32 %v369, %v366
    %v371 = vadd.f32 %v282, %v370
    %372 = vst [vmem:[#allocation2] sm:$0xff] %v371
    // Predicated region
    $region14: #{identity_model_forward.1} parent=1 // pred_check
      _
    $region15: #{identity_model_forward.1} parent=1 // pred_check_branch
      %374 = sbr.rel (0) target = $region17
    $region16: #{identity_model_forward.1} parent=1 // pred_region
      %s376 = ssub.s32 128, 128
      %377 = vsyncadd [#allocation3], %s376
      %s379 = sshll.u32 [#allocation2], 4
      %s380 = int_to_ptr.vmem [resolvable:$true] %s379
      %382 = dma.vmem_to_hbm [thread:$0]  %s380, 128, %s3, [#allocation3]
    $region17: #{identity_model_forward.1} parent=1 // pred_fallthru
      _
    // Predicated region
    $region18: #{identity_model_forward.1} parent=1 // pred_check
      _
    $region19: #{identity_model_forward.1} parent=1 // pred_check_branch
      %384 = sbr.rel (0) target = $region21
    $region20: #{identity_model_forward.1} parent=1 // pred_region
      %385 = dma.done [#allocation3], 128
    $region21: #{identity_model_forward.1} parent=1 // pred_fallthru
      _
    %386 = vsyncpa [#allocation3], 1

</llo_original>
